<compile_context>
chip_gen: v7x
topology: tpu7x:2x2x1
jax: 0.10.0
libtpu: 0.0.40
codegen_flags: <defaults>
</compile_context>

<pallas_src>
import math

import jax
import jax.numpy as jnp
from jax import lax
from jax.experimental import pallas as pl
from jax.experimental.pallas import tpu as pltpu


def _make_block_kernel(L1, L2, offs):
    """Kernel closure over static flat-geometry constants.

    offs[t] = ky*W + kx (row-major tap offset, t = ky*3 + kx).
    L2 = conv2 (output) slab length per tile, L1 = conv1 slab length per tile.
    Invariant (asserted in the wrapper): L1 = L2 + max(offs), Lx = L1 + max(offs),
    so every shifted tap read stays inside its slab.
    """

    def kernel(x_ref, w1_ref, b1_ref, w2_ref, b2_ref, o_ref):
        # x_ref : (1, 1, Cin, Lx)  halo-padded, flattened input tile (matmul dtype)
        # w1_ref: (Cout, 9*Cin)    im2col-packed conv1 weights (tap-major)
        # b1_ref: (Cout, 1)        f32
        # w2_ref: (Cout, 9*Cout)   im2col-packed conv2 weights
        # b2_ref: (Cout, 1)        f32
        # o_ref : (1, Cout, L2)    full-width conv2 slab tile (lane-dense store)
        x = x_ref[0, 0]            # (Cin, Lx)
        w1 = w1_ref[...]
        w2 = w2_ref[...]
        b1 = b1_ref[...]           # hoisted broadcast, f32
        b2 = b2_ref[...]

        # ---- conv1: one im2col GEMM, K = 9*Cin ---------------------------
        # Build the (9*Cin, L1) operand: 9 statically-shifted copies of the
        # lane-dense slab (this is the one copy pass im2col costs).
        xcol = jnp.concatenate([x[:, off:off + L1] for off in offs], axis=0)
        y1 = jnp.maximum(
            jnp.dot(w1, xcol, preferred_element_type=jnp.float32) + b1, 0.0)
        y1m = y1.astype(w2.dtype)   # MXU operand dtype for conv2

        # ---- conv2: one im2col GEMM, K = 9*Cout --------------------------
        ycol = jnp.concatenate([y1m[:, off:off + L2] for off in offs], axis=0)
        y2 = jnp.maximum(
            jnp.dot(w2, ycol, preferred_element_type=jnp.float32) + b2, 0.0)
        o_ref[0] = y2.astype(o_ref.dtype)   # full-width unmasked store

    return kernel


def unet_block_forward(x_nchw, w1_hwio, b1, w2_hwio, b2, *,
                       matmul_dtype=jnp.bfloat16, out_dtype=jnp.float32,
                       tile_rows=64):
    """x_nchw: (N, Cin, H, W); weights HWIO; returns (N, Cout, H-4, W-4)."""
    N, Cin, H, W = x_nchw.shape
    Cout = w1_hwio.shape[-1]
    H2, W2 = H - 4, W - 4
    assert H2 > 0 and W2 > 0, "image too small for two valid 3x3 convs"

    # ---- H-tile geometry (flat row-major index q = h*W + w) ---------------
    # Tile flat length must be a multiple of 128 lanes -> unmasked stores and
    # clean Blocked out_spec.  `unit` = rows per 128-lane alignment unit.
    unit = 128 // math.gcd(W, 128)
    TH2 = max(unit, (tile_rows // unit) * unit)           # target tile rows
    TH2 = min(TH2, ((H2 + unit - 1) // unit) * unit)      # don't exceed image
    nT = -(-H2 // TH2)                                    # number of H tiles
    H2p = nT * TH2                                        # padded conv2 rows

    L2 = TH2 * W               # conv2 output slab per tile (valid cols w < W2)
    L1 = L2 + 2 * W + 2        # conv1 slab must cover every conv2 tap read
    Lx = L1 + 2 * W + 2        # input slab must cover every conv1 tap read
    offs = tuple(ky * W + kx for ky in range(3) for kx in range(3))
    # Fragile-invariant guard (review): slab lengths tied to the tap bound.
    assert L1 == L2 + max(offs) and Lx == L1 + max(offs)

    # ---- input: NCHW -> (N, Cin, H*W) flat (no transpose), pad, halo-tile --
    Lpad = (nT - 1) * L2 + Lx                 # covers the last tile's tap reads
    x_flat = x_nchw.reshape(N, Cin, H * W).astype(matmul_dtype)
    x_flat = jnp.pad(x_flat, ((0, 0), (0, 0), (0, Lpad - H * W)))
    # Overlapping (4-row + 2) halo tiles, pre-gathered so BlockSpecs stay
    # plain Blocked dims (auto double-buffered DMA, megacore-parallel safe).
    x_tiles = jnp.stack(
        [x_flat[:, :, t * L2: t * L2 + Lx] for t in range(nT)], axis=1)

    # ---- weights: HWIO -> im2col-packed (Cout, 9*C), tap-major ------------
    w1p = jnp.transpose(w1_hwio, (3, 0, 1, 2)).reshape(Cout, 9 * Cin)
    w2p = jnp.transpose(w2_hwio, (3, 0, 1, 2)).reshape(Cout, 9 * Cout)
    w1p = w1p.astype(matmul_dtype)
    w2p = w2p.astype(matmul_dtype)
    b1r = b1.reshape(Cout, 1).astype(jnp.float32)
    b2r = b2.reshape(Cout, 1).astype(jnp.float32)

    kernel = _make_block_kernel(L1, L2, offs)

    out_flat = pl.pallas_call(
        kernel,
        out_shape=jax.ShapeDtypeStruct((N, Cout, H2p * W), out_dtype),
        grid_spec=pltpu.PrefetchScalarGridSpec(
            num_scalar_prefetch=0,
            grid=(N, nT),
            in_specs=[
                pl.BlockSpec((1, 1, Cin, Lx), lambda n, t: (n, t, 0, 0)),
                pl.BlockSpec((Cout, 9 * Cin), lambda n, t: (0, 0)),
                pl.BlockSpec((Cout, 1), lambda n, t: (0, 0)),
                pl.BlockSpec((Cout, 9 * Cout), lambda n, t: (0, 0)),
                pl.BlockSpec((Cout, 1), lambda n, t: (0, 0)),
            ],
            out_specs=pl.BlockSpec((1, Cout, L2), lambda n, t: (n, 0, t)),
        ),
        compiler_params=pltpu.CompilerParams(
            dimension_semantics=("parallel", "parallel")),
    )(x_tiles, w1p, b1r, w2p, b2r)

    # Drop the row-wrap garbage columns / padded rows and restore NCHW.
    # TODO(synk): fuse the 2x2 maxpool consumer into the kernel epilogue (or
    # let the next kernel consume the slab) to eliminate this strided crop.
    out = out_flat.reshape(N, Cout, H2p, W)[:, :, :H2, :W2]
    return out


def reference_forward(x_nchw, w1_hwio, b1, w2_hwio, b2):
    """Pure-JAX reference (same semantics as the PyTorch Block)."""
    dn = ("NCHW", "HWIO", "NCHW")
    y = lax.conv_general_dilated(x_nchw, w1_hwio, (1, 1), "VALID",
                                 dimension_numbers=dn)
    y = jnp.maximum(y + b1.reshape(1, -1, 1, 1), 0.0)
    y = lax.conv_general_dilated(y, w2_hwio, (1, 1), "VALID",
                                 dimension_numbers=dn)
    y = jnp.maximum(y + b2.reshape(1, -1, 1, 1), 0.0)
    return y


if __name__ == "__main__":
    # Block(in_ch=4, out_ch=8), input NCHW = (2, 4, 16, 16)
    N, IN_CH, OUT_CH, HW = 2, 4, 8, 16

    key = jax.random.PRNGKey(0)
    k_x, kw1, kb1, kw2, kb2 = jax.random.split(key, 5)

    x = jax.random.normal(k_x, (N, IN_CH, HW, HW), dtype=jnp.float32)
    w1 = 0.1 * jax.random.normal(kw1, (3, 3, IN_CH, OUT_CH), dtype=jnp.float32)
    b1 = 0.1 * jax.random.normal(kb1, (OUT_CH,), dtype=jnp.float32)
    w2 = 0.1 * jax.random.normal(kw2, (3, 3, OUT_CH, OUT_CH), dtype=jnp.float32)
    b2 = 0.1 * jax.random.normal(kb2, (OUT_CH,), dtype=jnp.float32)

    ref = jax.block_until_ready(reference_forward(x, w1, b1, w2, b2))

    # 1) f32 MXU operands, single H tile (exact check).
    out_f32 = jax.block_until_ready(
        unet_block_forward(x, w1, b1, w2, b2, matmul_dtype=jnp.float32))
    assert out_f32.shape == (N, OUT_CH, HW - 4, HW - 4), out_f32.shape
    err = float(jnp.max(jnp.abs(out_f32 - ref)))
    assert err < 1e-4, err

    # 2) default bf16 MXU operands + forced 2-way H tiling (halo path exercised).
    out_bf16 = jax.block_until_ready(
        unet_block_forward(x, w1, b1, w2, b2, tile_rows=8))
    assert out_bf16.shape == (N, OUT_CH, HW - 4, HW - 4), out_bf16.shape
    err_bf16 = float(jnp.max(jnp.abs(out_bf16 - ref)))
    assert err_bf16 < 5e-2, err_bf16

    print("KERNEL_OK")
</pallas_src>

<mosaic_0001>
module attributes {stable_mosaic.version = 11 : i64} {
  func.func @kernel(%arg0: i32, %arg1: i32, %arg2: memref<1x1x4x324xf32, #tpu.memory_space<vmem>>, %arg3: memref<8x36xf32, #tpu.memory_space<vmem>>, %arg4: memref<8x1xf32, #tpu.memory_space<vmem>>, %arg5: memref<8x72xf32, #tpu.memory_space<vmem>>, %arg6: memref<8x1xf32, #tpu.memory_space<vmem>>, %arg7: memref<1x8x256xf32, #tpu.memory_space<vmem>>) attributes {dimension_semantics = [#tpu.dimension_semantics<parallel>, #tpu.dimension_semantics<parallel>], iteration_bounds = array<i64: 2, 1>, scalar_prefetch = 0 : i64, scratch_operands = 0 : i64, tpu.core_type = #tpu.core_type<tc>, window_params = [{transform_indices = @transform_0, window_bounds = array<i64: 1, 1, 4, 324>}, {pipeline_mode = #tpu.pipeline_mode<synchronous>, transform_indices = @transform_1, window_bounds = array<i64: 8, 36>}, {pipeline_mode = #tpu.pipeline_mode<synchronous>, transform_indices = @transform_2, window_bounds = array<i64: 8, 1>}, {pipeline_mode = #tpu.pipeline_mode<synchronous>, transform_indices = @transform_3, window_bounds = array<i64: 8, 72>}, {pipeline_mode = #tpu.pipeline_mode<synchronous>, transform_indices = @transform_4, window_bounds = array<i64: 8, 1>}, {transform_indices = @transform_5, window_bounds = array<i64: 1, 8, 256>}]} {
    %c0 = arith.constant 0 : index
    %c0_0 = arith.constant 0 : index
    %c0_1 = arith.constant 0 : index
    %c0_2 = arith.constant 0 : index
    %0 = vector.load %arg2[%c0, %c0_0, %c0_1, %c0_2] : memref<1x1x4x324xf32, #tpu.memory_space<vmem>>, vector<1x1x4x324xf32>
    %1 = vector.shape_cast %0 : vector<1x1x4x324xf32> to vector<4x324xf32>
    %c0_3 = arith.constant 0 : index
    %c0_4 = arith.constant 0 : index
    %2 = vector.load %arg3[%c0_3, %c0_4] : memref<8x36xf32, #tpu.memory_space<vmem>>, vector<8x36xf32>
    %c0_5 = arith.constant 0 : index
    %c0_6 = arith.constant 0 : index
    %3 = vector.load %arg5[%c0_5, %c0_6] : memref<8x72xf32, #tpu.memory_space<vmem>>, vector<8x72xf32>
    %c0_7 = arith.constant 0 : index
    %c0_8 = arith.constant 0 : index
    %4 = vector.load %arg4[%c0_7, %c0_8] : memref<8x1xf32, #tpu.memory_space<vmem>>, vector<8x1xf32>
    %c0_9 = arith.constant 0 : index
    %c0_10 = arith.constant 0 : index
    %5 = vector.load %arg6[%c0_9, %c0_10] : memref<8x1xf32, #tpu.memory_space<vmem>>, vector<8x1xf32>
    %6 = vector.extract_strided_slice %1 {offsets = [0, 0], sizes = [4, 290], strides = [1, 1]} : vector<4x324xf32> to vector<4x290xf32>
    %7 = vector.extract_strided_slice %1 {offsets = [0, 1], sizes = [4, 290], strides = [1, 1]} : vector<4x324xf32> to vector<4x290xf32>
    %8 = vector.extract_strided_slice %1 {offsets = [0, 2], sizes = [4, 290], strides = [1, 1]} : vector<4x324xf32> to vector<4x290xf32>
    %9 = vector.extract_strided_slice %1 {offsets = [0, 16], sizes = [4, 290], strides = [1, 1]} : vector<4x324xf32> to vector<4x290xf32>
    %10 = vector.extract_strided_slice %1 {offsets = [0, 17], sizes = [4, 290], strides = [1, 1]} : vector<4x324xf32> to vector<4x290xf32>
    %11 = vector.extract_strided_slice %1 {offsets = [0, 18], sizes = [4, 290], strides = [1, 1]} : vector<4x324xf32> to vector<4x290xf32>
    %12 = vector.extract_strided_slice %1 {offsets = [0, 32], sizes = [4, 290], strides = [1, 1]} : vector<4x324xf32> to vector<4x290xf32>
    %13 = vector.extract_strided_slice %1 {offsets = [0, 33], sizes = [4, 290], strides = [1, 1]} : vector<4x324xf32> to vector<4x290xf32>
    %14 = vector.extract_strided_slice %1 {offsets = [0, 34], sizes = [4, 290], strides = [1, 1]} : vector<4x324xf32> to vector<4x290xf32>
    %15 = tpu.concatenate %6, %7, %8, %9, %10, %11, %12, %13, %14 in 0 : vector<4x290xf32>, vector<4x290xf32>, vector<4x290xf32>, vector<4x290xf32>, vector<4x290xf32>, vector<4x290xf32>, vector<4x290xf32>, vector<4x290xf32>, vector<4x290xf32> -> vector<36x290xf32>
    %cst = arith.constant dense<0.000000e+00> : vector<8x290xf32>
    %16 = tpu.matmul %2, %15, %cst {dimension_numbers = #tpu.dot_dimension_numbers<[1], [0], [0], [1], [0, 0, 1, 1], [], []>} : vector<8x36xf32>, vector<36x290xf32>, vector<8x290xf32> -> vector<8x290xf32>
    %17 = vector.broadcast %4 : vector<8x1xf32> to vector<8x290xf32>
    %18 = arith.addf %16, %17 : vector<8x290xf32>
    %cst_11 = arith.constant 0.000000e+00 : f32
    %19 = vector.broadcast %cst_11 : f32 to vector<8x290xf32>
    %20 = arith.maximumf %18, %19 : vector<8x290xf32>
    %21 = vector.extract_strided_slice %20 {offsets = [0, 0], sizes = [8, 256], strides = [1, 1]} : vector<8x290xf32> to vector<8x256xf32>
    %22 = vector.extract_strided_slice %20 {offsets = [0, 1], sizes = [8, 256], strides = [1, 1]} : vector<8x290xf32> to vector<8x256xf32>
    %23 = vector.extract_strided_slice %20 {offsets = [0, 2], sizes = [8, 256], strides = [1, 1]} : vector<8x290xf32> to vector<8x256xf32>
    %24 = vector.extract_strided_slice %20 {offsets = [0, 16], sizes = [8, 256], strides = [1, 1]} : vector<8x290xf32> to vector<8x256xf32>
    %25 = vector.extract_strided_slice %20 {offsets = [0, 17], sizes = [8, 256], strides = [1, 1]} : vector<8x290xf32> to vector<8x256xf32>
    %26 = vector.extract_strided_slice %20 {offsets = [0, 18], sizes = [8, 256], strides = [1, 1]} : vector<8x290xf32> to vector<8x256xf32>
    %27 = vector.extract_strided_slice %20 {offsets = [0, 32], sizes = [8, 256], strides = [1, 1]} : vector<8x290xf32> to vector<8x256xf32>
    %28 = vector.extract_strided_slice %20 {offsets = [0, 33], sizes = [8, 256], strides = [1, 1]} : vector<8x290xf32> to vector<8x256xf32>
    %29 = vector.extract_strided_slice %20 {offsets = [0, 34], sizes = [8, 256], strides = [1, 1]} : vector<8x290xf32> to vector<8x256xf32>
    %30 = tpu.concatenate %21, %22, %23, %24, %25, %26, %27, %28, %29 in 0 : vector<8x256xf32>, vector<8x256xf32>, vector<8x256xf32>, vector<8x256xf32>, vector<8x256xf32>, vector<8x256xf32>, vector<8x256xf32>, vector<8x256xf32>, vector<8x256xf32> -> vector<72x256xf32>
    %cst_12 = arith.constant dense<0.000000e+00> : vector<8x256xf32>
    %31 = tpu.matmul %3, %30, %cst_12 {dimension_numbers = #tpu.dot_dimension_numbers<[1], [0], [0], [1], [0, 0, 1, 1], [], []>} : vector<8x72xf32>, vector<72x256xf32>, vector<8x256xf32> -> vector<8x256xf32>
    %32 = vector.broadcast %5 : vector<8x1xf32> to vector<8x256xf32>
    %33 = arith.addf %31, %32 : vector<8x256xf32>
    %cst_13 = arith.constant 0.000000e+00 : f32
    %34 = vector.broadcast %cst_13 : f32 to vector<8x256xf32>
    %35 = arith.maximumf %33, %34 : vector<8x256xf32>
    %c0_14 = arith.constant 0 : index
    %c0_15 = arith.constant 0 : index
    %c0_16 = arith.constant 0 : index
    %36 = vector.load %arg7[%c0_14, %c0_15, %c0_16] : memref<1x8x256xf32, #tpu.memory_space<vmem>>, vector<1x8x256xf32>
    %37 = vector.shape_cast %36 : vector<1x8x256xf32> to vector<8x256xf32>
    %38 = vector.shape_cast %35 : vector<8x256xf32> to vector<1x8x256xf32>
    tpu.vector_store %arg7[%c0_14, %c0_15, %c0_16], %38 {strides = array<i32>} : memref<1x8x256xf32, #tpu.memory_space<vmem>>, vector<1x8x256xf32>,
    return
  }
  func.func @transform_0(%arg0: i32, %arg1: i32) -> (i32, i32, i32, i32) {
    %c0_i32 = arith.constant 0 : i32
    %c0_i32_0 = arith.constant 0 : i32
    %c0_i32_1 = arith.constant 0 : i32
    return %arg0, %arg1, %c0_i32, %c0_i32_0 : i32, i32, i32, i32
  }
  func.func @transform_1(%arg0: i32, %arg1: i32) -> (i32, i32) {
    %c0_i32 = arith.constant 0 : i32
    %c0_i32_0 = arith.constant 0 : i32
    %c0_i32_1 = arith.constant 0 : i32
    return %c0_i32, %c0_i32_0 : i32, i32
  }
  func.func @transform_2(%arg0: i32, %arg1: i32) -> (i32, i32) {
    %c0_i32 = arith.constant 0 : i32
    %c0_i32_0 = arith.constant 0 : i32
    %c0_i32_1 = arith.constant 0 : i32
    return %c0_i32, %c0_i32_0 : i32, i32
  }
  func.func @transform_3(%arg0: i32, %arg1: i32) -> (i32, i32) {
    %c0_i32 = arith.constant 0 : i32
    %c0_i32_0 = arith.constant 0 : i32
    %c0_i32_1 = arith.constant 0 : i32
    return %c0_i32, %c0_i32_0 : i32, i32
  }
  func.func @transform_4(%arg0: i32, %arg1: i32) -> (i32, i32) {
    %c0_i32 = arith.constant 0 : i32
    %c0_i32_0 = arith.constant 0 : i32
    %c0_i32_1 = arith.constant 0 : i32
    return %c0_i32, %c0_i32_0 : i32, i32
  }
  func.func @transform_5(%arg0: i32, %arg1: i32) -> (i32, i32, i32) {
    %c0_i32 = arith.constant 0 : i32
    %c0_i32_0 = arith.constant 0 : i32
    return %arg0, %c0_i32, %arg1 : i32, i32, i32
  }
}

</mosaic_0001>

<llo_original>
// kernel: tpu_custom_call.1
$region0: #{tpu_custom_call.1}
  #allocation0 [shape = 'u32[]', space=smem, size = 0x4, offset = 0x4, fixed_abs, tag = 'smem constant byte address 0x4 - core index']
  #allocation1 [shape = 'u32[144,128]{1,0:T(1,128)}', space=vmem, size = 0x12000, scoped, tag = 'internal scratch']
  %s0 = inlined_call_operand.hbm [shape: f32[2,1,4,324], index: 0, kind: input, shape index: {}]
  %s1 = inlined_call_operand.vmem [shape: f32[8,36], index: 1, kind: input, shape index: {}]
  %s2 = inlined_call_operand.vmem [shape: f32[8,1], index: 2, kind: input, shape index: {}]
  %s3 = inlined_call_operand.vmem [shape: f32[8,72], index: 3, kind: input, shape index: {}]
  %s4 = inlined_call_operand.vmem [shape: f32[8,1], index: 4, kind: input, shape index: {}]
  %s5 = inlined_call_operand.hbm [shape: f32[2,8,256], index: 5, kind: output, shape index: {}]
  %s6 = sld [smem:[#allocation0]]
  $region57: #{tpu_custom_call.1} parent=0
    _
  %s8 = ssub.s32 1, %s6
  %s9 = scalar_select 0, %s8, %s6
  $region1: #{tpu_custom_call.1} parent=0
    #allocation2 [shape = 'u8[12288]{0}', space=vmem, size = 0x3000, scoped, tag = 'input window, operand 0']
    #allocation3 [shape = 's32[2]{0}', space=sflag, size = 0x8, scoped, tag = 'scoped memory for tpu_custom_call.1']
    #allocation4 [shape = 's32[2]{0}', space=sflag, size = 0x8, scoped, tag = 'scoped memory for tpu_custom_call.1']
    #allocation5 [shape = 'u8[16384]{0}', space=vmem, size = 0x4000, scoped, tag = 'output window, operand 0']
    %10 = vsyncpa [#allocation3], 0
    %s11 = scalar_lea.sflag [#allocation3], 1
    %12 = vsyncpa %s11, 0
    %13 = vsyncpa [#allocation4], 0
    %s14 = scalar_lea.sflag [#allocation4], 1
    %15 = vsyncpa %s14, 0
    loop: start=0, step=1, limit=4
    $region2: #{tpu_custom_call.1} parent=1 // loop_pre_header
      _
    $region3: #{tpu_custom_call.1} parent=1 // loop_header
      %s17 = sphi 0, %s21
      %p18 = scmp.ge.s32.totalorder %s17, 4
      %s24 = sphi 0, %s36
      %s25 = sphi 0, %s32
      %s26 = sphi 0, %s24
      %s27 = sphi 0, %s25
      %s28 = sphi 0, %s26
      %s29 = sphi 0, %s27
      %s41 = sphi 0, %s43
      %s44 = sphi 0, %s41
      %s45 = sphi 0, %s44
      %s61 = sphi 0, %s45
      %s65 = sphi 0, %s65
      %s67 = sphi 0, %s65
      %s68 = sphi 0, %s67
      %s82 = sphi 0, %s68
      %s86 = sphi 0, %s86
      %s88 = sphi 0, %s86
      %s89 = sphi 0, %s88
      %s103 = sphi 0, %s89
      %s107 = sphi 0, %s107
      %s109 = sphi 0, %s107
      %s110 = sphi 0, %s109
      %s124 = sphi 0, %s110
      %s128 = sphi 0, %s128
      %s130 = sphi 0, %s128
      %s131 = sphi 0, %s130
      %s145 = sphi 0, %s131
      %s153 = sphi 0, %s155
      %s156 = sphi 0, %s153
      %s157 = sphi 0, %s156
      %s173 = sphi 0, %s157
    $region4: #{tpu_custom_call.1} parent=1 // loop_header_branch
      %20 = sbr.rel (%p18) target = $region8
    $region5: #{tpu_custom_call.1} parent=1 // loop_body
      %s22 = ssub.s32 %s17, 1
      %s23 = ssub.s32 %s17, 2
      %s30 = sadd.s32 1, %s25
      %p31 = scmp.ge.s32.totalorder %s30, 1
      %s32 = scalar_select %p31, 0, %s30
      %s33 = sadd.s32 1, %s24
      %s34 = scalar_select %p31, %s33, %s24
      %p35 = scmp.ge.s32.totalorder %s34, 2
      %s36 = scalar_select %p35, 0, %s34
      %s37 = ssub.s32 %s24, %s36
      %s38 = ssub.s32 %s25, %s32
      %s39 = sor.u32 %s37, %s38
      %p40 = scmp.eq.s32.totalorder %s39, 0
      %s42 = sadd.s32 %s41, 1
      %s43 = scalar_select %p40, %s41, %s42
      %p46 = pneg %p40
      %p47 = scmp.eq.s32.totalorder %s17, 1
      %p48 = por %p46, %p47
      %p49 = scmp.ne.s32.totalorder %s41, %s44
      %p50 = scmp.eq.s32.totalorder %s17, 0
      %p51 = por %p49, %p50
      %p52 = scmp.ne.s32.totalorder %s41, %s44
      %p53 = scmp.eq.s32.totalorder %s22, 1
      %p54 = por %p52, %p53
      %p55 = scmp.ne.s32.totalorder %s44, %s45
      %p56 = scmp.eq.s32.totalorder %s22, 0
      %p57 = por %p55, %p56
      %p58 = scmp.ne.s32.totalorder %s44, %s45
      %p59 = scmp.eq.s32.totalorder %s23, 1
      %p60 = por %p58, %p59
      %p62 = scmp.ne.s32.totalorder %s45, %s61
      %p63 = scmp.eq.s32.totalorder %s23, 0
      %p64 = por %p62, %p63
      %s66 = sadd.s32 %s65, 1
      %p69 = scmp.eq.s32.totalorder %s17, 1
      %p70 = scmp.ne.s32.totalorder %s65, %s67
      %p71 = scmp.eq.s32.totalorder %s17, 0
      %p72 = por %p70, %p71
      %p73 = scmp.ne.s32.totalorder %s65, %s67
      %p74 = scmp.eq.s32.totalorder %s22, 1
      %p75 = por %p73, %p74
      %p76 = scmp.ne.s32.totalorder %s67, %s68
      %p77 = scmp.eq.s32.totalorder %s22, 0
      %p78 = por %p76, %p77
      %p79 = scmp.ne.s32.totalorder %s67, %s68
      %p80 = scmp.eq.s32.totalorder %s23, 1
      %p81 = por %p79, %p80
      %p83 = scmp.ne.s32.totalorder %s68, %s82
      %p84 = scmp.eq.s32.totalorder %s23, 0
      %p85 = por %p83, %p84
      %s87 = sadd.s32 %s86, 1
      %p90 = scmp.eq.s32.totalorder %s17, 1
      %p91 = scmp.ne.s32.totalorder %s86, %s88
      %p92 = scmp.eq.s32.totalorder %s17, 0
      %p93 = por %p91, %p92
      %p94 = scmp.ne.s32.totalorder %s86, %s88
      %p95 = scmp.eq.s32.totalorder %s22, 1
      %p96 = por %p94, %p95
      %p97 = scmp.ne.s32.totalorder %s88, %s89
      %p98 = scmp.eq.s32.totalorder %s22, 0
      %p99 = por %p97, %p98
      %p100 = scmp.ne.s32.totalorder %s88, %s89
      %p101 = scmp.eq.s32.totalorder %s23, 1
      %p102 = por %p100, %p101
      %p104 = scmp.ne.s32.totalorder %s89, %s103
      %p105 = scmp.eq.s32.totalorder %s23, 0
      %p106 = por %p104, %p105
      %s108 = sadd.s32 %s107, 1
      %p111 = scmp.eq.s32.totalorder %s17, 1
      %p112 = scmp.ne.s32.totalorder %s107, %s109
      %p113 = scmp.eq.s32.totalorder %s17, 0
      %p114 = por %p112, %p113
      %p115 = scmp.ne.s32.totalorder %s107, %s109
      %p116 = scmp.eq.s32.totalorder %s22, 1
      %p117 = por %p115, %p116
      %p118 = scmp.ne.s32.totalorder %s109, %s110
      %p119 = scmp.eq.s32.totalorder %s22, 0
      %p120 = por %p118, %p119
      %p121 = scmp.ne.s32.totalorder %s109, %s110
      %p122 = scmp.eq.s32.totalorder %s23, 1
      %p123 = por %p121, %p122
      %p125 = scmp.ne.s32.totalorder %s110, %s124
      %p126 = scmp.eq.s32.totalorder %s23, 0
      %p127 = por %p125, %p126
      %s129 = sadd.s32 %s128, 1
      %p132 = scmp.eq.s32.totalorder %s17, 1
      %p133 = scmp.ne.s32.totalorder %s128, %s130
      %p134 = scmp.eq.s32.totalorder %s17, 0
      %p135 = por %p133, %p134
      %p136 = scmp.ne.s32.totalorder %s128, %s130
      %p137 = scmp.eq.s32.totalorder %s22, 1
      %p138 = por %p136, %p137
      %p139 = scmp.ne.s32.totalorder %s130, %s131
      %p140 = scmp.eq.s32.totalorder %s22, 0
      %p141 = por %p139, %p140
      %p142 = scmp.ne.s32.totalorder %s130, %s131
      %p143 = scmp.eq.s32.totalorder %s23, 1
      %p144 = por %p142, %p143
      %p146 = scmp.ne.s32.totalorder %s131, %s145
      %p147 = scmp.eq.s32.totalorder %s23, 0
      %p148 = por %p146, %p147
      %s149 = ssub.s32 %s24, %s36
      %s150 = ssub.s32 %s25, %s32
      %s151 = sor.u32 %s149, %s150
      %p152 = scmp.eq.s32.totalorder %s151, 0
      %s154 = sadd.s32 %s153, 1
      %s155 = scalar_select %p152, %s153, %s154
      %p158 = pneg %p152
      %p159 = scmp.eq.s32.totalorder %s17, 1
      %p160 = por %p158, %p159
      %p161 = scmp.ne.s32.totalorder %s153, %s156
      %p162 = scmp.eq.s32.totalorder %s17, 0
      %p163 = por %p161, %p162
      %p164 = scmp.ne.s32.totalorder %s153, %s156
      %p165 = scmp.eq.s32.totalorder %s22, 1
      %p166 = por %p164, %p165
      %p167 = scmp.ne.s32.totalorder %s156, %s157
      %p168 = scmp.eq.s32.totalorder %s22, 0
      %p169 = por %p167, %p168
      %p170 = scmp.ne.s32.totalorder %s156, %s157
      %p171 = scmp.eq.s32.totalorder %s23, 1
      %p172 = por %p170, %p171
      %p174 = scmp.ne.s32.totalorder %s157, %s173
      %p175 = scmp.eq.s32.totalorder %s23, 0
      %p176 = por %p174, %p175
      %p177 = scmp.le.s32.totalorder 1, %s17
      %p178 = scmp.lt.s32.totalorder %s17, 3
      %p179 = pnand %p177, %p178
      %p180 = pneg %p179
      // Predicated region
      $region9: #{tpu_custom_call.1} parent=5 // pred_check
        _
      $region10: #{tpu_custom_call.1} parent=5 // pred_check_branch
        %182 = sbr.rel (%p179) target = $region12
      $region11: #{tpu_custom_call.1} parent=5 // pred_region
        %s183 = ssub.s32 %s17, 1
        // Predicated region
        $region13: #{tpu_custom_call.1} parent=11 // pred_check
          %p184 = pneg %p78
        $region14: #{tpu_custom_call.1} parent=11 // pred_check_branch
          %186 = sbr.rel (%p184) target = $region16
        $region15: #{tpu_custom_call.1} parent=11 // pred_region
          _
        $region16: #{tpu_custom_call.1} parent=11 // pred_fallthru
          _
        // Predicated region
        $region17: #{tpu_custom_call.1} parent=11 // pred_check
          %p187 = pneg %p99
        $region18: #{tpu_custom_call.1} parent=11 // pred_check_branch
          %189 = sbr.rel (%p187) target = $region20
        $region19: #{tpu_custom_call.1} parent=11 // pred_region
          _
        $region20: #{tpu_custom_call.1} parent=11 // pred_fallthru
          _
        // Predicated region
        $region21: #{tpu_custom_call.1} parent=11 // pred_check
          %p190 = pneg %p120
        $region22: #{tpu_custom_call.1} parent=11 // pred_check_branch
          %192 = sbr.rel (%p190) target = $region24
        $region23: #{tpu_custom_call.1} parent=11 // pred_region
          _
        $region24: #{tpu_custom_call.1} parent=11 // pred_fallthru
          _
        // Predicated region
        $region25: #{tpu_custom_call.1} parent=11 // pred_check
          %p193 = pneg %p141
        $region26: #{tpu_custom_call.1} parent=11 // pred_check_branch
          %195 = sbr.rel (%p193) target = $region28
        $region27: #{tpu_custom_call.1} parent=11 // pred_region
          _
        $region28: #{tpu_custom_call.1} parent=11 // pred_fallthru
          _
      $region12: #{tpu_custom_call.1} parent=5 // pred_fallthru
        _
      %p196 = scmp.lt.s32.totalorder %s17, 2
      // Predicated region
      $region29: #{tpu_custom_call.1} parent=5 // pred_check
        %p197 = pneg %p196
      $region30: #{tpu_custom_call.1} parent=5 // pred_check_branch
        %199 = sbr.rel (%p197) target = $region32
      $region31: #{tpu_custom_call.1} parent=5 // pred_region
        // Predicated region
        $region33: #{tpu_custom_call.1} parent=31 // pred_check
          %p200 = pneg %p51
        $region34: #{tpu_custom_call.1} parent=31 // pred_check_branch
          %202 = sbr.rel (%p200) target = $region36
        $region35: #{tpu_custom_call.1} parent=31 // pred_region
          %s203 = sand.u32 %s41, 1
          %s204 = scalar_lea.sflag [#allocation3], %s203
          %s205 = sand.u32 %s41, 1
          %s206 = smul.addr %s205, 12
          %s207 = scalar_lea.vmem [#allocation2], %s206
          %s209 = ssub.s32 192, 192
          %210 = vsyncadd %s204, %s209
          %s211 = smul.addr %s25, 3
          %s212 = smul.addr %s24, 3
          %s213 = sadd.s32 %s211, %s212
          %s214 = smul.addr %s213, 64
          %s215 = scalar_lea.hbm %s0, %s214
          %s217 = sshll.u32 %s207, 4
          %s218 = int_to_ptr.vmem [resolvable:$true] %s217
          %220 = dma.hbm_to_vmem [thread:$0]  %s215, 192, %s218, %s204
        $region36: #{tpu_custom_call.1} parent=31 // pred_fallthru
          _
      $region32: #{tpu_custom_call.1} parent=5 // pred_fallthru
        _
      %p221 = scmp.le.s32.totalorder 1, %s17
      %p222 = scmp.lt.s32.totalorder %s17, 3
      %p223 = pnand %p221, %p222
      %p224 = pneg %p223
      // Predicated region
      $region37: #{tpu_custom_call.1} parent=5 // pred_check
        _
      $region38: #{tpu_custom_call.1} parent=5 // pred_check_branch
        %226 = sbr.rel (%p223) target = $region40
      $region39: #{tpu_custom_call.1} parent=5 // pred_region
        %s227 = ssub.s32 %s17, 1
        %s228 = sand.u32 %s44, 1
        %s229 = scalar_lea.sflag [#allocation3], %s228
        %s230 = sand.u32 %s44, 1
        %s231 = smul.addr %s230, 12
        %s232 = scalar_lea.vmem [#allocation2], %s231
        // Predicated region
        $region41: #{tpu_custom_call.1} parent=39 // pred_check
          %p233 = pneg %p57
        $region42: #{tpu_custom_call.1} parent=39 // pred_check_branch
          %235 = sbr.rel (%p233) target = $region44
        $region43: #{tpu_custom_call.1} parent=39 // pred_region
          %236 = dma.done %s229, 192
        $region44: #{tpu_custom_call.1} parent=39 // pred_fallthru
          _
        %s237 = sand.u32 %s44, 1
        %s238 = scalar_lea.sflag [#allocation3], %s237
        %s239 = sand.u32 %s44, 1
        %s240 = smul.addr %s239, 12
        %s241 = scalar_lea.vmem [#allocation2], %s240
        %p242 = pneg %p57
        %p243 = pneg %p54
        %p244 = pneg %p78
        %p245 = pneg %p75
        %p246 = pneg %p99
        %p247 = pneg %p96
        %p248 = pneg %p120
        %p249 = pneg %p117
        %p250 = pneg %p141
        %p251 = pneg %p138
        %p252 = pneg %p169
        %p253 = pneg %p166
        %s254 = sand.u32 %s156, 1
        %s255 = scalar_lea.sflag [#allocation4], %s254
        %s256 = sand.u32 %s156, 1
        %s257 = smul.addr %s256, 16
        %s258 = scalar_lea.vmem [#allocation5], %s257
        %s259 = smul.u32 2, %s27
        %v260 = vld [vmem:[%s232] sm:$0xff]
        %v261 = vld [vmem:[%s232 + $0x8] sm:$0xf]
        %v262 = vld [vmem:[%s1] sm:$0xff]
        %v263 = vld [vmem:[%s3] sm:$0xff]
        %v264 = vld [vmem:[%s2] sm:$0xff]
        %v265 = vld [vmem:[%s4] sm:$0xff]
        %v268 = vcombine.high %v260, %v260
        %v270 = vcombine.low %v260, %v260
        %v271 = vcombine.low %v261, %v261
        %272 = vrot.lane.b32.xlu0 %v270, 127
        %v273 = vpop.permute.xlu0 %272
        %274 = vrot.lane.b32.xlu0 %v260, 127
        %v275 = vpop.permute.xlu0 %274
        %276 = vrot.lane.b32.xlu0 %v271, 127
        %v277 = vpop.permute.xlu0 %276
        %vm278 = vcmask 1039360
        %v279 = vsel %vm278, %v273, %v275
        %v280 = vsel %vm278, %v275, %v277
        %284 = vrot.lane.b32.xlu0 %v260, 126
        %v285 = vpop.permute.xlu0 %284
        %286 = vrot.lane.b32.xlu0 %v268, 126
        %v287 = vpop.permute.xlu0 %286
        %288 = vrot.lane.b32.xlu0 %v261, 126
        %v289 = vpop.permute.xlu0 %288
        %vm290 = vcmask 1031168
        %v291 = vsel %vm290, %v285, %v287
        %v292 = vsel %vm290, %v287, %v289
        %296 = vrot.lane.b32.xlu0 %v270, 112
        %v297 = vpop.permute.xlu0 %296
        %298 = vrot.lane.b32.xlu0 %v260, 112
        %v299 = vpop.permute.xlu0 %298
        %300 = vrot.lane.b32.xlu0 %v271, 112
        %v301 = vpop.permute.xlu0 %300
        %vm302 = vcmask 916480
        %v303 = vsel %vm302, %v297, %v299
        %v304 = vsel %vm302, %v299, %v301
        %308 = vrot.lane.b32.xlu0 %v260, 111
        %v309 = vpop.permute.xlu0 %308
        %310 = vrot.lane.b32.xlu0 %v268, 111
        %v311 = vpop.permute.xlu0 %310
        %312 = vrot.lane.b32.xlu0 %v261, 111
        %v313 = vpop.permute.xlu0 %312
        %vm314 = vcmask 908288
        %v315 = vsel %vm314, %v309, %v311
        %v316 = vsel %vm314, %v311, %v313
        %320 = vrot.lane.b32.xlu0 %v270, 110
        %v321 = vpop.permute.xlu0 %320
        %322 = vrot.lane.b32.xlu0 %v260, 110
        %v323 = vpop.permute.xlu0 %322
        %324 = vrot.lane.b32.xlu0 %v271, 110
        %v325 = vpop.permute.xlu0 %324
        %vm326 = vcmask 900096
        %v327 = vsel %vm326, %v321, %v323
        %v328 = vsel %vm326, %v323, %v325
        %332 = vrot.lane.b32.xlu0 %v260, 96
        %v333 = vpop.permute.xlu0 %332
        %334 = vrot.lane.b32.xlu0 %v268, 96
        %v335 = vpop.permute.xlu0 %334
        %336 = vrot.lane.b32.xlu0 %v261, 96
        %v337 = vpop.permute.xlu0 %336
        %vm338 = vcmask 785408
        %v339 = vsel %vm338, %v333, %v335
        %v340 = vsel %vm338, %v335, %v337
        %344 = vrot.lane.b32.xlu0 %v270, 95
        %v345 = vpop.permute.xlu0 %344
        %346 = vrot.lane.b32.xlu0 %v260, 95
        %v347 = vpop.permute.xlu0 %346
        %348 = vrot.lane.b32.xlu0 %v271, 95
        %v349 = vpop.permute.xlu0 %348
        %vm350 = vcmask 777216
        %v351 = vsel %vm350, %v345, %v347
        %v352 = vsel %vm350, %v347, %v349
        %356 = vrot.lane.b32.xlu0 %v260, 94
        %v357 = vpop.permute.xlu0 %356
        %358 = vrot.lane.b32.xlu0 %v268, 94
        %v359 = vpop.permute.xlu0 %358
        %360 = vrot.lane.b32.xlu0 %v261, 94
        %v361 = vpop.permute.xlu0 %360
        %vm362 = vcmask 769024
        %v363 = vsel %vm362, %v357, %v359
        %v364 = vsel %vm362, %v359, %v361
        %vm365 = vcmask 1043456
        %v366 = vsel %vm365, %v260, %v279
        %v367 = vsel %vm365, %v268, %v280
        %v368 = vsel %vm365, %v261, %v277
        %v369 = vsel %vm365, %v291, %v303
        %v370 = vsel %vm365, %v292, %v304
        %v371 = vsel %vm365, %v289, %v301
        %v372 = vsel %vm365, %v315, %v327
        %v373 = vsel %vm365, %v316, %v328
        %v374 = vsel %vm365, %v313, %v325
        %v375 = vsel %vm365, %v339, %v351
        %v376 = vsel %vm365, %v340, %v352
        %v377 = vsel %vm365, %v337, %v349
        %379 = vset.pattern.permute.xlu0 0
        %380 = vperm.xlu0 %379, %v264
        %v381 = vpop.permute.xlu0 %380
        %vm383 = vcmask 293888
        %v385 = vsel %vm383, %v262, 0
        %v387 = vsel %vm365, %v363, 0
        %v389 = vsel %vm365, %v364, 0
        %v391 = vsel %vm365, %v361, 0
        %393 = vmatprep.subr.mxu0 %v367
        %394 = vmatpush1.msra.mxu0 %v366
        %395 = vmatprep.subr.mxu0 %v370
        %396 = vmatpush1.msra.mxu0 %v369
        %397 = vmatprep.subr.mxu0 %v373
        %398 = vmatpush1.msra.mxu0 %v372
        %399 = vmatprep.subr.mxu0 %v376
        %400 = vmatpush1.msra.mxu0 %v375
        %401 = vmatprep.subr.mxu0 %v389
        %402 = vmatpush1.msra.mxu0 %v387
        %403 = vmatprep.subr.mxu0 0.0
        %404 = vmatpush1.msra.mxu0 0.0
        %405 = vmatprep.subr.mxu0 0.0
        %406 = vmatpush1.msra.mxu0 0.0
        %407 = vmatprep.subr.mxu0 0.0
        %408 = vmatpush1.msra.mxu0 0.0
        %409 = vmatprep.subr.mxu0 0.0
        %410 = vmatpush1.msra.mxu0 0.0
        %411 = vmatprep.subr.mxu0 0.0
        %412 = vmatpush1.msra.mxu0 0.0
        %413 = vmatprep.subr.mxu0 0.0
        %414 = vmatpush1.msra.mxu0 0.0
        %415 = vmatprep.subr.mxu0 0.0
        %416 = vmatpush1.msra.mxu0 0.0
        %417 = vmatprep.subr.mxu0 0.0
        %418 = vmatpush1.msra.mxu0 0.0
        %419 = vmatprep.subr.mxu0 0.0
        %420 = vmatpush1.msra.mxu0 0.0
        %421 = vmatprep.subr.mxu0 0.0
        %422 = vmatpush1.msra.mxu0 0.0
        %423 = vmatprep.subr.mxu0 0.0
        %424 = vmatpush1.msra.mxu0 0.0
        %425 = vmatprep.subr.mxu0 0.0
        %426 = vmatpush1.msra.mxu0 0.0
        %427 = vmatprep.subr.mxu0 0.0
        %428 = vmatpush1.msra.mxu0 0.0
        %429 = vmatprep.subr.mxu0 0.0
        %430 = vmatpush1.msra.mxu0 0.0
        %431 = vmatprep.subr.mxu0 0.0
        %432 = vmatpush1.msra.mxu0 0.0
        %433 = vmatprep.subr.mxu0 0.0
        %434 = vmatpush1.msra.mxu0 0.0
        %435 = vmatprep.subr.mxu0 0.0
        %436 = vmatpush1.msra.mxu0 0.0
        %437 = vmatprep.subr.mxu0 0.0
        %438 = vmatpush1.msra.mxu0 0.0
        %439 = vmatprep.subr.mxu0 0.0
        %440 = vmatpush1.msra.mxu0 0.0
        %441 = vmatprep.subr.mxu0 0.0
        %442 = vmatpush1.msra.mxu0 0.0
        %443 = vmatprep.subr.mxu0 0.0
        %444 = vmatpush1.msra.mxu0 0.0
        %445 = vmatprep.subr.mxu0 0.0
        %446 = vmatpush1.msra.mxu0 0.0
        %447 = vmatprep.subr.mxu0 0.0
        %448 = vmatpush1.msra.mxu0 0.0
        %449 = vmatprep.subr.mxu0 0.0
        %450 = vmatpush1.msra.mxu0 0.0
        %451 = vmatprep.subr.mxu0 0.0
        %452 = vmatpush1.msra.mxu0 0.0
        %453 = vmatprep.subr.mxu0 0.0
        %454 = vmatpush1.msra.mxu0 0.0
        %455 = vmatprep.subr.mxu0 0.0
        %456 = vmatpush1.msra.mxu0 0.0
        %457 = vmatprep.mubr.f32.mxu0 0.0
        %458 = vmatmul.mubr.f32.gmra.mrb[0].mxu0 %v385
        %v459 = vpop.f32.mrb[0].mxu0
        %v460 = vadd.f32 %v381, %v459
        %v461 = vpop.f32.mrb[0].mxu0
        %v462 = vadd.f32 %v381, %v461
        %463 = vdwg.mxu0
        %464 = vmatprep.subr.mxu0 0.0
        %465 = vmatpush1.msra.mxu0 %v368
        %466 = vmatprep.subr.mxu0 0.0
        %467 = vmatpush1.msra.mxu0 %v371
        %468 = vmatprep.subr.mxu0 0.0
        %469 = vmatpush1.msra.mxu0 %v374
        %470 = vmatprep.subr.mxu0 0.0
        %471 = vmatpush1.msra.mxu0 %v377
        %472 = vmatprep.subr.mxu0 0.0
        %473 = vmatpush1.msra.mxu0 %v391
        %474 = vmatprep.subr.mxu0 0.0
        %475 = vmatpush1.msra.mxu0 0.0
        %476 = vmatprep.subr.mxu0 0.0
        %477 = vmatpush1.msra.mxu0 0.0
        %478 = vmatprep.subr.mxu0 0.0
        %479 = vmatpush1.msra.mxu0 0.0
        %480 = vmatprep.subr.mxu0 0.0
        %481 = vmatpush1.msra.mxu0 0.0
        %482 = vmatprep.subr.mxu0 0.0
        %483 = vmatpush1.msra.mxu0 0.0
        %484 = vmatprep.subr.mxu0 0.0
        %485 = vmatpush1.msra.mxu0 0.0
        %486 = vmatprep.subr.mxu0 0.0
        %487 = vmatpush1.msra.mxu0 0.0
        %488 = vmatprep.subr.mxu0 0.0
        %489 = vmatpush1.msra.mxu0 0.0
        %490 = vmatprep.subr.mxu0 0.0
        %491 = vmatpush1.msra.mxu0 0.0
        %492 = vmatprep.subr.mxu0 0.0
        %493 = vmatpush1.msra.mxu0 0.0
        %494 = vmatprep.subr.mxu0 0.0
        %495 = vmatpush1.msra.mxu0 0.0
        %496 = vmatprep.subr.mxu0 0.0
        %497 = vmatpush1.msra.mxu0 0.0
        %498 = vmatprep.subr.mxu0 0.0
        %499 = vmatpush1.msra.mxu0 0.0
        %500 = vmatprep.subr.mxu0 0.0
        %501 = vmatpush1.msra.mxu0 0.0
        %502 = vmatprep.subr.mxu0 0.0
        %503 = vmatpush1.msra.mxu0 0.0
        %504 = vmatprep.subr.mxu0 0.0
        %505 = vmatpush1.msra.mxu0 0.0
        %506 = vmatprep.subr.mxu0 0.0
        %507 = vmatpush1.msra.mxu0 0.0
        %508 = vmatprep.subr.mxu0 0.0
        %509 = vmatpush1.msra.mxu0 0.0
        %510 = vmatprep.subr.mxu0 0.0
        %511 = vmatpush1.msra.mxu0 0.0
        %512 = vmatprep.subr.mxu0 0.0
        %513 = vmatpush1.msra.mxu0 0.0
        %514 = vmatprep.subr.mxu0 0.0
        %515 = vmatpush1.msra.mxu0 0.0
        %516 = vmatprep.subr.mxu0 0.0
        %517 = vmatpush1.msra.mxu0 0.0
        %518 = vmatprep.subr.mxu0 0.0
        %519 = vmatpush1.msra.mxu0 0.0
        %520 = vmatprep.subr.mxu0 0.0
        %521 = vmatpush1.msra.mxu0 0.0
        %522 = vmatprep.subr.mxu0 0.0
        %523 = vmatpush1.msra.mxu0 0.0
        %524 = vmatprep.subr.mxu0 0.0
        %525 = vmatpush1.msra.mxu0 0.0
        %526 = vmatprep.subr.mxu0 0.0
        %527 = vmatpush1.msra.mxu0 0.0
        %528 = vmatprep.mubr.f32.mxu0 0.0
        %529 = vmatmul.mubr.f32.gmra.mrb[0].mxu0 %v385
        %v530 = vpop.f32.mrb[0].mxu0
        %v531 = vadd.f32 %v381, %v530
        %v532 = vpop.f32.mrb[0].mxu0
        %533 = vdwg.mxu0
        %v534 = vmax.f32 %v460, 0.0
        %v535 = vmax.f32 %v462, 0.0
        %v536 = vmax.f32 %v531, 0.0
        %540 = vrot.lane.b32.xlu0 %v534, 127
        %v541 = vpop.permute.xlu0 %540
        %542 = vrot.lane.b32.xlu0 %v535, 127
        %v543 = vpop.permute.xlu0 %542
        %544 = vrot.lane.b32.xlu0 %v536, 127
        %v545 = vpop.permute.xlu0 %544
        %v546 = vsel %vm278, %v541, %v543
        %v547 = vsel %vm278, %v543, %v545
        %550 = vrot.lane.b32.xlu0 %v534, 126
        %v551 = vpop.permute.xlu0 %550
        %552 = vrot.lane.b32.xlu0 %v535, 126
        %v553 = vpop.permute.xlu0 %552
        %554 = vrot.lane.b32.xlu0 %v536, 126
        %v555 = vpop.permute.xlu0 %554
        %v556 = vsel %vm290, %v551, %v553
        %v557 = vsel %vm290, %v553, %v555
        %560 = vrot.lane.b32.xlu0 %v534, 112
        %v561 = vpop.permute.xlu0 %560
        %562 = vrot.lane.b32.xlu0 %v535, 112
        %v563 = vpop.permute.xlu0 %562
        %564 = vrot.lane.b32.xlu0 %v536, 112
        %v565 = vpop.permute.xlu0 %564
        %v566 = vsel %vm302, %v561, %v563
        %v567 = vsel %vm302, %v563, %v565
        %570 = vrot.lane.b32.xlu0 %v534, 111
        %v571 = vpop.permute.xlu0 %570
        %572 = vrot.lane.b32.xlu0 %v535, 111
        %v573 = vpop.permute.xlu0 %572
        %574 = vrot.lane.b32.xlu0 %v536, 111
        %v575 = vpop.permute.xlu0 %574
        %v576 = vsel %vm314, %v571, %v573
        %v577 = vsel %vm314, %v573, %v575
        %580 = vrot.lane.b32.xlu0 %v534, 110
        %v581 = vpop.permute.xlu0 %580
        %582 = vrot.lane.b32.xlu0 %v535, 110
        %v583 = vpop.permute.xlu0 %582
        %584 = vrot.lane.b32.xlu0 %v536, 110
        %v585 = vpop.permute.xlu0 %584
        %v586 = vsel %vm326, %v581, %v583
        %v587 = vsel %vm326, %v583, %v585
        %590 = vrot.lane.b32.xlu0 %v534, 96
        %v591 = vpop.permute.xlu0 %590
        %592 = vrot.lane.b32.xlu0 %v535, 96
        %v593 = vpop.permute.xlu0 %592
        %594 = vrot.lane.b32.xlu0 %v536, 96
        %v595 = vpop.permute.xlu0 %594
        %v596 = vsel %vm338, %v591, %v593
        %v597 = vsel %vm338, %v593, %v595
        %600 = vrot.lane.b32.xlu0 %v534, 95
        %v601 = vpop.permute.xlu0 %600
        %602 = vrot.lane.b32.xlu0 %v535, 95
        %v603 = vpop.permute.xlu0 %602
        %604 = vrot.lane.b32.xlu0 %v536, 95
        %v605 = vpop.permute.xlu0 %604
        %v606 = vsel %vm350, %v601, %v603
        %v607 = vsel %vm350, %v603, %v605
        %610 = vrot.lane.b32.xlu0 %v534, 94
        %v611 = vpop.permute.xlu0 %610
        %612 = vrot.lane.b32.xlu0 %v535, 94
        %v613 = vpop.permute.xlu0 %612
        %614 = vrot.lane.b32.xlu0 %v536, 94
        %v615 = vpop.permute.xlu0 %614
        %v616 = vsel %vm362, %v611, %v613
        %v617 = vsel %vm362, %v613, %v615
        %621 = vset.pattern.permute.xlu0 0
        %622 = vperm.xlu0 %621, %v265
        %v623 = vpop.permute.xlu0 %622
        %vm625 = vcmask 588800
        %v627 = vsel %vm625, %v263, 0
        %629 = vmatprep.subr.mxu0 %v535
        %630 = vmatpush1.msra.mxu0 %v534
        %631 = vmatprep.subr.mxu0 %v547
        %632 = vmatpush1.msra.mxu0 %v546
        %633 = vmatprep.subr.mxu0 %v557
        %634 = vmatpush1.msra.mxu0 %v556
        %635 = vmatprep.subr.mxu0 %v567
        %636 = vmatpush1.msra.mxu0 %v566
        %637 = vmatprep.subr.mxu0 %v577
        %638 = vmatpush1.msra.mxu0 %v576
        %639 = vmatprep.subr.mxu0 %v587
        %640 = vmatpush1.msra.mxu0 %v586
        %641 = vmatprep.subr.mxu0 %v597
        %642 = vmatpush1.msra.mxu0 %v596
        %643 = vmatprep.subr.mxu0 %v607
        %644 = vmatpush1.msra.mxu0 %v606
        %645 = vmatprep.subr.mxu0 %v617
        %646 = vmatpush1.msra.mxu0 %v616
        %647 = vmatprep.subr.mxu0 0.0
        %648 = vmatpush1.msra.mxu0 0.0
        %649 = vmatprep.subr.mxu0 0.0
        %650 = vmatpush1.msra.mxu0 0.0
        %651 = vmatprep.subr.mxu0 0.0
        %652 = vmatpush1.msra.mxu0 0.0
        %653 = vmatprep.subr.mxu0 0.0
        %654 = vmatpush1.msra.mxu0 0.0
        %655 = vmatprep.subr.mxu0 0.0
        %656 = vmatpush1.msra.mxu0 0.0
        %657 = vmatprep.subr.mxu0 0.0
        %658 = vmatpush1.msra.mxu0 0.0
        %659 = vmatprep.subr.mxu0 0.0
        %660 = vmatpush1.msra.mxu0 0.0
        %661 = vmatprep.subr.mxu0 0.0
        %662 = vmatpush1.msra.mxu0 0.0
        %663 = vmatprep.subr.mxu0 0.0
        %664 = vmatpush1.msra.mxu0 0.0
        %665 = vmatprep.subr.mxu0 0.0
        %666 = vmatpush1.msra.mxu0 0.0
        %667 = vmatprep.subr.mxu0 0.0
        %668 = vmatpush1.msra.mxu0 0.0
        %669 = vmatprep.subr.mxu0 0.0
        %670 = vmatpush1.msra.mxu0 0.0
        %671 = vmatprep.subr.mxu0 0.0
        %672 = vmatpush1.msra.mxu0 0.0
        %673 = vmatprep.subr.mxu0 0.0
        %674 = vmatpush1.msra.mxu0 0.0
        %675 = vmatprep.subr.mxu0 0.0
        %676 = vmatpush1.msra.mxu0 0.0
        %677 = vmatprep.subr.mxu0 0.0
        %678 = vmatpush1.msra.mxu0 0.0
        %679 = vmatprep.subr.mxu0 0.0
        %680 = vmatpush1.msra.mxu0 0.0
        %681 = vmatprep.subr.mxu0 0.0
        %682 = vmatpush1.msra.mxu0 0.0
        %683 = vmatprep.subr.mxu0 0.0
        %684 = vmatpush1.msra.mxu0 0.0
        %685 = vmatprep.subr.mxu0 0.0
        %686 = vmatpush1.msra.mxu0 0.0
        %687 = vmatprep.subr.mxu0 0.0
        %688 = vmatpush1.msra.mxu0 0.0
        %689 = vmatprep.subr.mxu0 0.0
        %690 = vmatpush1.msra.mxu0 0.0
        %691 = vmatprep.subr.mxu0 0.0
        %692 = vmatpush1.msra.mxu0 0.0
        %693 = vmatprep.mubr.f32.mxu0 0.0
        %694 = vmatmul.mubr.f32.gmra.mrb[0].mxu0 %v627
        %v695 = vpop.f32.mrb[0].mxu0
        %v696 = vadd.f32 %v623, %v695
        %v697 = vpop.f32.mrb[0].mxu0
        %v698 = vadd.f32 %v623, %v697
        %699 = vdwg.mxu0
        %v700 = vmax.f32 %v696, 0.0
        %v701 = vmax.f32 %v698, 0.0
        %702 = vst [vmem:[%s258] sm:$0xff] %v700
        %703 = vst [vmem:[%s258 + $0x8] sm:$0xff] %v701
        %s704 = sand.u32 %s156, 1
        %s705 = scalar_lea.sflag [#allocation4], %s704
        %s706 = sand.u32 %s156, 1
        %s707 = smul.addr %s706, 16
        %s708 = scalar_lea.vmem [#allocation5], %s707
        // Predicated region
        $region45: #{tpu_custom_call.1} parent=39 // pred_check
          %p709 = pneg %p166
        $region46: #{tpu_custom_call.1} parent=39 // pred_check_branch
          %711 = sbr.rel (%p709) target = $region48
        $region47: #{tpu_custom_call.1} parent=39 // pred_region
          %s712 = smul.u32 2, %s27
          %s714 = ssub.s32 256, 256
          %715 = vsyncadd %s705, %s714
          %s716 = smul.addr %s26, 2
          %s717 = sadd.s32 %s712, %s716
          %s718 = smul.addr %s717, 128
          %s719 = scalar_lea.hbm %s5, %s718
          %s721 = sshll.u32 %s708, 4
          %s722 = int_to_ptr.vmem [resolvable:$true] %s721
          %724 = dma.vmem_to_hbm [thread:$0]  %s722, 256, %s719, %s705
        $region48: #{tpu_custom_call.1} parent=39 // pred_fallthru
          _
      $region40: #{tpu_custom_call.1} parent=5 // pred_fallthru
        _
      %p725 = scmp.le.s32.totalorder 2, %s17
      // Predicated region
      $region49: #{tpu_custom_call.1} parent=5 // pred_check
        %p726 = pneg %p725
      $region50: #{tpu_custom_call.1} parent=5 // pred_check_branch
        %728 = sbr.rel (%p726) target = $region52
      $region51: #{tpu_custom_call.1} parent=5 // pred_region
        %s729 = ssub.s32 %s17, 2
        // Predicated region
        $region53: #{tpu_custom_call.1} parent=51 // pred_check
          %p730 = pneg %p172
        $region54: #{tpu_custom_call.1} parent=51 // pred_check_branch
          %732 = sbr.rel (%p730) target = $region56
        $region55: #{tpu_custom_call.1} parent=51 // pred_region
          %s733 = sand.u32 %s157, 1
          %s734 = scalar_lea.sflag [#allocation4], %s733
          %s735 = sand.u32 %s157, 1
          %s736 = smul.addr %s735, 16
          %s737 = scalar_lea.vmem [#allocation5], %s736
          %738 = dma.done %s734, 256
        $region56: #{tpu_custom_call.1} parent=51 // pred_fallthru
          _
      $region52: #{tpu_custom_call.1} parent=5 // pred_fallthru
        _
    $region6: #{tpu_custom_call.1} parent=1 // loop_footer
      %s21 = sadd.s32 1, %s17
    $region7: #{tpu_custom_call.1} parent=1 // loop_footer_branch
      %16 = sbr.rel target = $region3
    $region8: #{tpu_custom_call.1} parent=1 // loop_exit
      _
    %739 = vsyncpa [#allocation3], 1
    %s740 = scalar_lea.sflag [#allocation3], 1
    %741 = vsyncpa %s740, 1
    %742 = vsyncpa [#allocation4], 1
    %s743 = scalar_lea.sflag [#allocation4], 1
    %744 = vsyncpa %s743, 1

</llo_original>
